<compile_context>
chip_gen: v5e
topology: v5e:2x2
jax: 0.10.0
libtpu: 0.0.40
codegen_flags: <defaults>
</compile_context>

<pallas_src>
import math

import jax
import jax.numpy as jnp
from jax.experimental import pallas as pl
from jax.experimental.pallas import tpu as pltpu


def _round_up(x, m):
    return (x + m - 1) // m * m


def _cdiv(a, b):
    return (a + b - 1) // b


def _pe_kernel(scale_ref, x_ref, pe_ref, o_ref):
    # scale_ref: SMEM (1,) f32        (nn.Parameter(torch.ones(1)))
    # x_ref:     VMEM (ts, B, D)
    # pe_ref:    VMEM (ts, D)          (2-D pe tile, already in x.dtype)
    # o_ref:     VMEM (ts, B, D)
    x = x_ref[...]
    scale = scale_ref[0].astype(x.dtype)
    # (ts, 1, D) view broadcast over batch; the add is a plain VPU op in x.dtype.
    pe_scaled = (scale * pe_ref[...])[:, None, :]
    o_ref[...] = x + pe_scaled


def make_positional_encoding_table(max_len, d_model, dtype=jnp.float32):
    """2-D pe table (max_len, d_model) with the same values as the PyTorch
    register_buffer (which is (max_len, 1, d_model)); the size-1 dim is dropped
    so every pe block DMA is a dense (8,128)-tiled copy."""
    position = jnp.arange(max_len, dtype=jnp.float32)[:, None]            # (L, 1)
    div_term = jnp.exp(
        jnp.arange(0, d_model, 2, dtype=jnp.float32) * (-math.log(10000.0) / d_model)
    )
    pe = jnp.zeros((max_len, d_model), jnp.float32)
    pe = pe.at[:, 0::2].set(jnp.sin(position * div_term))
    if d_model % 2 == 1:
        pe = pe.at[:, 1::2].set(jnp.cos(position * div_term[:-1]))
    else:
        pe = pe.at[:, 1::2].set(jnp.cos(position * div_term))
    return pe.astype(dtype)                                               # (L, D)


def _pick_seq_tile(S, padded_row_bytes, *, target_block_bytes, prefer_even_steps=True):
    """ts = multiple of 8 seq rows per block, sized toward target_block_bytes.
    grid = cdiv(S, ts); if >1 step, prefer an even step count (v7x megacore)."""
    max_rows = max(8, (target_block_bytes // max(1, padded_row_bytes)) // 8 * 8)
    ts = min(max_rows, _round_up(S, 8))
    steps = _cdiv(S, ts)
    if prefer_even_steps and steps > 1 and steps % 2 == 1:
        ts = max(8, _round_up(_cdiv(S, steps + 1), 8))
        steps = _cdiv(S, ts)
    return ts, steps


def positional_encoding_forward(x, pe_table, scale, *,
                                target_block_bytes=8 << 20,
                                donate_x=False):
    """x: (S, B, D);  pe_table: (max_len, D);  scale: (1,) f32 parameter."""
    S, B, D = x.shape
    max_len, d_model = pe_table.shape
    assert d_model == D and S <= max_len

    # Cast the (small, static) table / parameter once in the wrapper so the
    # kernel moves exactly 2R+1W of x-sized traffic with no per-block converts.
    pe_table = pe_table.astype(x.dtype)
    scale = jnp.asarray(scale, jnp.float32).reshape((1,))

    itemsize = jnp.dtype(x.dtype).itemsize
    sublane = 8 * max(1, 4 // itemsize)          # 8 (f32), 16 (bf16), 32 (i8)
    lane = 128

    # Padded VMEM bytes of one seq row of x (the (B, D) slab is what gets tiled).
    x_row_bytes = _round_up(B, sublane) * _round_up(D, lane) * itemsize
    ts, steps = _pick_seq_tile(S, x_row_bytes, target_block_bytes=target_block_bytes)

    # VMEM budget: double-buffered x, out and pe blocks (padded) + headroom,
    # clamped below v7x's 64 MiB physical VMEM.
    x_blk = ts * x_row_bytes
    pe_blk = _round_up(ts, sublane) * _round_up(D, lane) * itemsize
    vmem_need = 2 * (2 * x_blk + pe_blk) + (2 << 20)
    vmem_limit = int(min(max(16 << 20, vmem_need), 60 << 20))

    return pl.pallas_call(
        _pe_kernel,
        out_shape=jax.ShapeDtypeStruct((S, B, D), x.dtype),
        grid_spec=pltpu.PrefetchScalarGridSpec(
            num_scalar_prefetch=0,
            grid=(steps,),
            in_specs=[
                pl.BlockSpec(memory_space=pltpu.MemorySpace.SMEM),   # scale (1,) f32
                pl.BlockSpec((ts, B, D), lambda i: (i, 0, 0)),       # x tile
                pl.BlockSpec((ts, D), lambda i: (i, 0)),             # pe tile (full table passed)
            ],
            out_specs=pl.BlockSpec((ts, B, D), lambda i: (i, 0, 0)),
        ),
        compiler_params=pltpu.CompilerParams(
            dimension_semantics=("parallel",),   # seq blocks independent -> megacore split on v7x
            vmem_limit_bytes=vmem_limit,
        ),
        # x is input index 1 (after scale); aliasing halves peak HBM footprint
        # when the caller donates x (does not change the 2R+1W bandwidth).
        input_output_aliases=({1: 0} if donate_x else {}),
    )(scale, x, pe_table)


if __name__ == "__main__":
    # Small but TPU-friendly shapes: lane-dense d_model=128, sublane-dense batch=8.
    S, B, D = 16, 8, 128
    MAX_LEN = 64

    key = jax.random.PRNGKey(0)
    x = jax.random.normal(key, (S, B, D), dtype=jnp.float32)

    scale = jnp.ones((1,), dtype=jnp.float32)              # nn.Parameter(torch.ones(1))
    pe_table = make_positional_encoding_table(MAX_LEN, D, dtype=x.dtype)   # (64, 128)

    out = positional_encoding_forward(x, pe_table, scale)
    out = jax.block_until_ready(out)

    # pure-JAX reference check (eval-mode dropout == identity)
    ref = x + scale[0] * pe_table[:S][:, None, :].astype(x.dtype)
    assert out.shape == (S, B, D)
    assert jnp.allclose(out, ref, atol=1e-6, rtol=1e-6)

    print("KERNEL_OK")
</pallas_src>

<mosaic_0001>
module attributes {stable_mosaic.version = 11 : i64} {
  func.func @_pe_kernel(%arg0: i32, %arg1: memref<1xf32, #tpu.memory_space<smem>>, %arg2: memref<16x8x128xf32, #tpu.memory_space<vmem>>, %arg3: memref<16x128xf32, #tpu.memory_space<vmem>>, %arg4: memref<16x8x128xf32, #tpu.memory_space<vmem>>) attributes {dimension_semantics = [#tpu.dimension_semantics<parallel>], iteration_bounds = array<i64: 1>, scalar_prefetch = 0 : i64, scratch_operands = 0 : i64, tpu.core_type = #tpu.core_type<tc>, window_params = [{transform_indices = @transform_0, window_bounds = array<i64: 1>}, {transform_indices = @transform_1, window_bounds = array<i64: 16, 8, 128>}, {transform_indices = @transform_2, window_bounds = array<i64: 16, 128>}, {transform_indices = @transform_3, window_bounds = array<i64: 16, 8, 128>}]} {
    %c0 = arith.constant 0 : index
    %c0_0 = arith.constant 0 : index
    %c0_1 = arith.constant 0 : index
    %0 = vector.load %arg2[%c0, %c0_0, %c0_1] : memref<16x8x128xf32, #tpu.memory_space<vmem>>, vector<16x8x128xf32>
    %c0_2 = arith.constant 0 : index
    %1 = memref.load %arg1[%c0_2] : memref<1xf32, #tpu.memory_space<smem>>
    %c0_3 = arith.constant 0 : index
    %c0_4 = arith.constant 0 : index
    %2 = vector.load %arg3[%c0_3, %c0_4] : memref<16x128xf32, #tpu.memory_space<vmem>>, vector<16x128xf32>
    %3 = vector.broadcast %1 : f32 to vector<16x128xf32>
    %4 = arith.mulf %3, %2 : vector<16x128xf32>
    %5 = vector.shape_cast %4 : vector<16x128xf32> to vector<16x1x128xf32>
    %6 = vector.broadcast %5 : vector<16x1x128xf32> to vector<16x8x128xf32>
    %7 = arith.addf %0, %6 : vector<16x8x128xf32>
    %c0_5 = arith.constant 0 : index
    %c0_6 = arith.constant 0 : index
    %c0_7 = arith.constant 0 : index
    %8 = vector.load %arg4[%c0_5, %c0_6, %c0_7] : memref<16x8x128xf32, #tpu.memory_space<vmem>>, vector<16x8x128xf32>
    tpu.vector_store %arg4[%c0_5, %c0_6, %c0_7], %7 {strides = array<i32>} : memref<16x8x128xf32, #tpu.memory_space<vmem>>, vector<16x8x128xf32>,
    return
  }
  func.func @transform_0(%arg0: i32) -> i32 {
    %c0_i32 = arith.constant 0 : i32
    %c0_i32_0 = arith.constant 0 : i32
    return %c0_i32 : i32
  }
  func.func @transform_1(%arg0: i32) -> (i32, i32, i32) {
    %c0_i32 = arith.constant 0 : i32
    %c0_i32_0 = arith.constant 0 : i32
    %c0_i32_1 = arith.constant 0 : i32
    return %arg0, %c0_i32, %c0_i32_0 : i32, i32, i32
  }
  func.func @transform_2(%arg0: i32) -> (i32, i32) {
    %c0_i32 = arith.constant 0 : i32
    %c0_i32_0 = arith.constant 0 : i32
    return %arg0, %c0_i32 : i32, i32
  }
  func.func @transform_3(%arg0: i32) -> (i32, i32, i32) {
    %c0_i32 = arith.constant 0 : i32
    %c0_i32_0 = arith.constant 0 : i32
    %c0_i32_1 = arith.constant 0 : i32
    return %arg0, %c0_i32, %c0_i32_0 : i32, i32, i32
  }
}

</mosaic_0001>

<llo_original>
// kernel: tpu_custom_call.1
$region0: #{tpu_custom_call.1}
  #allocation0 [shape = 'u32[]', space=smem, size = 0x4, offset = 0x4, fixed_abs, tag = 'smem constant byte address 0x4 - core index']
  #allocation1 [shape = 'u32[72,128]{1,0:T(1,128)}', space=vmem, size = 0x9000, scoped, tag = 'internal scratch']
  #allocation2 [shape = 'f32[1]{0:T(128)S(6)}', space=smem, size = 0x200, scoped, tag = 'scoped memory for tpu_custom_call.1']
  %s0 = inlined_call_operand.<no memory space> [shape: f32[1], index: 0, kind: input, shape index: {}]
  %s1 = inlined_call_operand.hbm [shape: f32[16,8,128], index: 1, kind: input, shape index: {}]
  %s2 = inlined_call_operand.hbm [shape: f32[64,128], index: 2, kind: input, shape index: {}]
  %s3 = inlined_call_operand.hbm [shape: f32[16,8,128], index: 3, kind: output, shape index: {}]
  %s4 = sld [smem:[#allocation0]]
  $region30: #{tpu_custom_call.1} parent=0
    _
  %s6 = ssub.s32 1, %s4
  %s7 = scalar_select 0, %s6, %s4
  %8 = sst [smem:[#allocation2]] %s0
  $region1: #{tpu_custom_call.1} parent=0
    #allocation3 [shape = 'u8[65536]{0}', space=vmem, size = 0x10000, scoped, tag = 'input window, operand 1, single buffered']
    #allocation4 [shape = 's32[1]{0}', space=sflag, size = 0x4, scoped, tag = 'scoped memory for tpu_custom_call.1']
    #allocation5 [shape = 's32[1]{0}', space=sflag, size = 0x4, scoped, tag = 'scoped memory for tpu_custom_call.1']
    #allocation6 [shape = 'u8[8192]{0}', space=vmem, size = 0x2000, scoped, tag = 'input window, operand 2, single buffered']
    #allocation7 [shape = 's32[1]{0}', space=sflag, size = 0x4, scoped, tag = 'scoped memory for tpu_custom_call.1']
    #allocation8 [shape = 'u8[65536]{0}', space=vmem, size = 0x10000, scoped, tag = 'output window, operand 0, single buffered']
    %9 = vsyncpa [#allocation4], 0
    %10 = vsyncpa [#allocation7], 0
    %11 = vsyncpa [#allocation5], 0
    // Predicated region
    $region2: #{tpu_custom_call.1} parent=1 // pred_check
      _
    $region3: #{tpu_custom_call.1} parent=1 // pred_check_branch
      %13 = sbr.rel (0) target = $region5
    $region4: #{tpu_custom_call.1} parent=1 // pred_region
      _
    $region5: #{tpu_custom_call.1} parent=1 // pred_fallthru
      _
    // Predicated region
    $region6: #{tpu_custom_call.1} parent=1 // pred_check
      _
    $region7: #{tpu_custom_call.1} parent=1 // pred_check_branch
      %15 = sbr.rel (0) target = $region9
    $region8: #{tpu_custom_call.1} parent=1 // pred_region
      %17 = vsyncadd [#allocation4], 0
      %s18 = sshll.u32 %s1, 4
      %s19 = int_to_ptr.hbm [resolvable:$true] %s18
      %s20 = sshll.u32 [#allocation3], 4
      %s21 = int_to_ptr.vmem [resolvable:$true] %s20
      %26 = dma.hbm_to_vmem [thread:$0]  %s19, 2048, %s21, [#allocation4], 128, 128, 8
    $region9: #{tpu_custom_call.1} parent=1 // pred_fallthru
      _
    // Predicated region
    $region10: #{tpu_custom_call.1} parent=1 // pred_check
      _
    $region11: #{tpu_custom_call.1} parent=1 // pred_check_branch
      %28 = sbr.rel (0) target = $region13
    $region12: #{tpu_custom_call.1} parent=1 // pred_region
      %30 = vsyncadd [#allocation7], 0
      %s31 = sshll.u32 %s2, 4
      %s32 = int_to_ptr.hbm [resolvable:$true] %s31
      %s33 = sshll.u32 [#allocation6], 4
      %s34 = int_to_ptr.vmem [resolvable:$true] %s33
      %39 = dma.hbm_to_vmem [thread:$0]  %s32, 256, %s34, [#allocation7], 128, 128, 8
    $region13: #{tpu_custom_call.1} parent=1 // pred_fallthru
      _
    // Predicated region
    $region14: #{tpu_custom_call.1} parent=1 // pred_check
      _
    $region15: #{tpu_custom_call.1} parent=1 // pred_check_branch
      %41 = sbr.rel (0) target = $region17
    $region16: #{tpu_custom_call.1} parent=1 // pred_region
      %43 = dma.done [#allocation4], 2048
    $region17: #{tpu_custom_call.1} parent=1 // pred_fallthru
      _
    // Predicated region
    $region18: #{tpu_custom_call.1} parent=1 // pred_check
      _
    $region19: #{tpu_custom_call.1} parent=1 // pred_check_branch
      %45 = sbr.rel (0) target = $region21
    $region20: #{tpu_custom_call.1} parent=1 // pred_region
      %47 = dma.done [#allocation7], 256
    $region21: #{tpu_custom_call.1} parent=1 // pred_fallthru
      _
    %v48 = vld [vmem:[#allocation3] sm:$0xff]
    %v49 = vld [vmem:[#allocation3 + $0x8] sm:$0xff]
    %v50 = vld [vmem:[#allocation3 + $0x10] sm:$0xff]
    %v51 = vld [vmem:[#allocation3 + $0x18] sm:$0xff]
    %v52 = vld [vmem:[#allocation3 + $0x20] sm:$0xff]
    %v53 = vld [vmem:[#allocation3 + $0x28] sm:$0xff]
    %v54 = vld [vmem:[#allocation3 + $0x30] sm:$0xff]
    %v55 = vld [vmem:[#allocation3 + $0x38] sm:$0xff]
    %v56 = vld [vmem:[#allocation3 + $0x40] sm:$0xff]
    %v57 = vld [vmem:[#allocation3 + $0x48] sm:$0xff]
    %v58 = vld [vmem:[#allocation3 + $0x50] sm:$0xff]
    %v59 = vld [vmem:[#allocation3 + $0x58] sm:$0xff]
    %v60 = vld [vmem:[#allocation3 + $0x60] sm:$0xff]
    %v61 = vld [vmem:[#allocation3 + $0x68] sm:$0xff]
    %v62 = vld [vmem:[#allocation3 + $0x70] sm:$0xff]
    %v63 = vld [vmem:[#allocation3 + $0x78] sm:$0xff]
    %s64 = sld [smem:[#allocation2]]
    %v65 = vld [vmem:[#allocation6] sm:$0xff]
    %v66 = vld [vmem:[#allocation6 + $0x8] sm:$0xff]
    %v67 = vstv %s64
    %v68 = vmul.f32 %v67, %v65
    %v69 = vmul.f32 %v67, %v66
    %v72 = vrot.slane %v68, 1
    %v73 = vrot.slane %v68, 2
    %v74 = vrot.slane %v68, 3
    %v75 = vrot.slane %v68, 4
    %v76 = vrot.slane %v68, 5
    %v77 = vrot.slane %v68, 6
    %v78 = vrot.slane %v68, 7
    %v79 = vrot.slane %v69, 1
    %v80 = vrot.slane %v69, 2
    %v81 = vrot.slane %v69, 3
    %v82 = vrot.slane %v69, 4
    %v83 = vrot.slane %v69, 5
    %v84 = vrot.slane %v69, 6
    %v85 = vrot.slane %v69, 7
    %v86 = vperm.slane %v68, 0
    %v87 = vperm.slane %v72, 0
    %v88 = vperm.slane %v73, 0
    %v89 = vperm.slane %v74, 0
    %v90 = vperm.slane %v75, 0
    %v91 = vperm.slane %v76, 0
    %v92 = vperm.slane %v77, 0
    %v93 = vperm.slane %v78, 0
    %v94 = vperm.slane %v69, 0
    %v95 = vperm.slane %v79, 0
    %v96 = vperm.slane %v80, 0
    %v97 = vperm.slane %v81, 0
    %v98 = vperm.slane %v82, 0
    %v99 = vperm.slane %v83, 0
    %v100 = vperm.slane %v84, 0
    %v101 = vperm.slane %v85, 0
    %v118 = vadd.f32 %v48, %v86
    %v119 = vadd.f32 %v49, %v87
    %v120 = vadd.f32 %v50, %v88
    %v121 = vadd.f32 %v51, %v89
    %v122 = vadd.f32 %v52, %v90
    %v123 = vadd.f32 %v53, %v91
    %v124 = vadd.f32 %v54, %v92
    %v125 = vadd.f32 %v55, %v93
    %v126 = vadd.f32 %v56, %v94
    %v127 = vadd.f32 %v57, %v95
    %v128 = vadd.f32 %v58, %v96
    %v129 = vadd.f32 %v59, %v97
    %v130 = vadd.f32 %v60, %v98
    %v131 = vadd.f32 %v61, %v99
    %v132 = vadd.f32 %v62, %v100
    %v133 = vadd.f32 %v63, %v101
    %134 = vst [vmem:[#allocation8] sm:$0xff] %v118
    %135 = vst [vmem:[#allocation8 + $0x8] sm:$0xff] %v119
    %136 = vst [vmem:[#allocation8 + $0x10] sm:$0xff] %v120
    %137 = vst [vmem:[#allocation8 + $0x18] sm:$0xff] %v121
    %138 = vst [vmem:[#allocation8 + $0x20] sm:$0xff] %v122
    %139 = vst [vmem:[#allocation8 + $0x28] sm:$0xff] %v123
    %140 = vst [vmem:[#allocation8 + $0x30] sm:$0xff] %v124
    %141 = vst [vmem:[#allocation8 + $0x38] sm:$0xff] %v125
    %142 = vst [vmem:[#allocation8 + $0x40] sm:$0xff] %v126
    %143 = vst [vmem:[#allocation8 + $0x48] sm:$0xff] %v127
    %144 = vst [vmem:[#allocation8 + $0x50] sm:$0xff] %v128
    %145 = vst [vmem:[#allocation8 + $0x58] sm:$0xff] %v129
    %146 = vst [vmem:[#allocation8 + $0x60] sm:$0xff] %v130
    %147 = vst [vmem:[#allocation8 + $0x68] sm:$0xff] %v131
    %148 = vst [vmem:[#allocation8 + $0x70] sm:$0xff] %v132
    %149 = vst [vmem:[#allocation8 + $0x78] sm:$0xff] %v133
    // Predicated region
    $region22: #{tpu_custom_call.1} parent=1 // pred_check
      _
    $region23: #{tpu_custom_call.1} parent=1 // pred_check_branch
      %151 = sbr.rel (0) target = $region25
    $region24: #{tpu_custom_call.1} parent=1 // pred_region
      %153 = vsyncadd [#allocation5], 0
      %s154 = sshll.u32 [#allocation8], 4
      %s155 = int_to_ptr.vmem [resolvable:$true] %s154
      %s156 = sshll.u32 %s3, 4
      %s157 = int_to_ptr.hbm [resolvable:$true] %s156
      %162 = dma.vmem_to_hbm [thread:$0]  %s155, 2048, %s157, [#allocation5], 128, 128, 8
    $region25: #{tpu_custom_call.1} parent=1 // pred_fallthru
      _
    // Predicated region
    $region26: #{tpu_custom_call.1} parent=1 // pred_check
      _
    $region27: #{tpu_custom_call.1} parent=1 // pred_check_branch
      %164 = sbr.rel (0) target = $region29
    $region28: #{tpu_custom_call.1} parent=1 // pred_region
      %166 = dma.done [#allocation5], 2048
    $region29: #{tpu_custom_call.1} parent=1 // pred_fallthru
      _
    %167 = vsyncpa [#allocation4], 1
    %168 = vsyncpa [#allocation7], 1
    %169 = vsyncpa [#allocation5], 1

</llo_original>
